<compile_context>
chip_gen: v5e
topology: v5e:2x2
jax: 0.10.0
libtpu: 0.0.40
codegen_flags: <defaults>
</compile_context>

<pallas_src>
import functools
import math

import jax
import jax.numpy as jnp
from jax import lax
from jax.experimental import pallas as pl
from jax.experimental.pallas import tpu as pltpu

_LN_EPS = 1e-5
_GELU_C = 0.7978845608028654  # sqrt(2/pi)


# ----------------------------------------------------------------------------
# Shared math helpers (used both inside kernels and in the pure-JAX reference)
# ----------------------------------------------------------------------------
def _layer_norm(z, w, b):
    mu = jnp.mean(z, axis=-1, keepdims=True)
    var = jnp.mean(jnp.square(z - mu), axis=-1, keepdims=True)
    return (z - mu) * lax.rsqrt(var + _LN_EPS) * w + b


def _gelu_tanh(x):
    # TODO(synk): PyTorch nn.GELU() default is the exact erf form; tanh
    # approximation is used here for guaranteed Mosaic lowering (~1e-3 diff).
    return 0.5 * x * (1.0 + jnp.tanh(_GELU_C * (x + 0.044715 * x * x * x)))


# ----------------------------------------------------------------------------
# Kernels
# ----------------------------------------------------------------------------
def _embed_kernel(idx_ref, wte_ref, wpe_ref, o_ref):
    """tok_emb[idx] + pos_emb for one batch row; gather via dynamic row loads."""
    b = pl.program_id(0)
    seq_len = o_ref.shape[1]
    for t in range(seq_len):  # static unroll; T is small and compile-time known
        tok = idx_ref[b, t]
        row = wte_ref[pl.ds(tok, 1), :] + wpe_ref[pl.ds(t, 1), :]  # (1, C)
        o_ref[0, pl.ds(t, 1), :] = row
    # TODO(synk): training-mode embedding dropout not implemented (eval identity).


def _block_kernel(x_ref, ln1w_ref, ln1b_ref, wqkv_ref, bqkv_ref,
                  wout_ref, bout_ref, ln2w_ref, ln2b_ref,
                  w1_ref, b1_ref, w2_ref, b2_ref, o_ref, *, head_cnt, scale):
    """One full transformer Block for one batch element, entirely in VMEM."""
    x = x_ref[0]                                   # (T, C) f32, resident tile
    T, C = x.shape
    D = C // head_cnt

    # ---- ln1 + fused QKV projection -------------------------------------
    h = _layer_norm(x, ln1w_ref[...], ln1b_ref[...])
    qkv = jnp.dot(h, wqkv_ref[...],
                  preferred_element_type=jnp.float32) + bqkv_ref[...]  # (T, 3C)

    # ---- causal multi-head attention (all heads in this grid step) ------
    row = lax.broadcasted_iota(jnp.int32, (T, T), 0)
    col = lax.broadcasted_iota(jnp.int32, (T, T), 1)
    causal = col <= row                            # built once per grid step
    neg = jnp.float32(-1e30)                       # finite: NaN-safe masking

    heads = []
    for hd in range(head_cnt):                     # static unroll (H is small)
        lo = hd * D
        q = qkv[:, lo:lo + D]                      # (T, D) static lane slices
        k = qkv[:, C + lo:C + lo + D]
        v = qkv[:, 2 * C + lo:2 * C + lo + D]
        s = lax.dot_general(q, k, (((1,), (1,)), ((), ())),
                            preferred_element_type=jnp.float32) * scale
        s = jnp.where(causal, s, neg)
        m = jnp.max(s, axis=-1, keepdims=True)
        e = jnp.exp(s - m)
        p = e * pl.reciprocal(jnp.sum(e, axis=-1, keepdims=True), approx=True)
        heads.append(jnp.dot(p, v, preferred_element_type=jnp.float32))
    y = jnp.concatenate(heads, axis=-1)            # lane-dense (T, C) merge

    attn = jnp.dot(y, wout_ref[...],
                   preferred_element_type=jnp.float32) + bout_ref[...]
    x = x + attn                                   # residual 1

    # ---- ln2 + feed-forward ----------------------------------------------
    h2 = _layer_norm(x, ln2w_ref[...], ln2b_ref[...])
    f = jnp.dot(h2, w1_ref[...], preferred_element_type=jnp.float32) + b1_ref[...]
    f = _gelu_tanh(f)
    f = jnp.dot(f, w2_ref[...], preferred_element_type=jnp.float32) + b2_ref[...]

    o_ref[0] = (x + f).astype(o_ref.dtype)         # residual 2
    # TODO(synk): training-mode dropout (attention / residual / FF) not implemented.


def _lm_head_kernel(x_ref, lnw_ref, lnb_ref, w_ref, o_ref):
    """Final LayerNorm + tied-off LM projection (no bias), last position only."""
    xn = _layer_norm(x_ref[...], lnw_ref[...], lnb_ref[...])
    o_ref[...] = jnp.dot(xn, w_ref[...],
                         preferred_element_type=jnp.float32).astype(o_ref.dtype)


# ----------------------------------------------------------------------------
# Wrappers
# ----------------------------------------------------------------------------
def pallas_embed(idx, wte, wpe):
    B, T = idx.shape
    V, C = wte.shape
    P = wpe.shape[0]
    gs = pltpu.PrefetchScalarGridSpec(
        num_scalar_prefetch=1,
        grid=(B,),
        in_specs=[
            pl.BlockSpec((V, C), lambda b, idx_ref: (0, 0)),   # full wte table
            pl.BlockSpec((P, C), lambda b, idx_ref: (0, 0)),   # full wpe table
        ],
        out_specs=pl.BlockSpec((1, T, C), lambda b, idx_ref: (b, 0, 0)),
    )
    return pl.pallas_call(
        _embed_kernel,
        out_shape=jax.ShapeDtypeStruct((B, T, C), wte.dtype),
        grid_spec=gs,
        compiler_params=pltpu.CompilerParams(dimension_semantics=("arbitrary",)),
    )(idx, wte, wpe)


def pallas_block(x, bp, head_cnt):
    B, T, C = x.shape
    D = C // head_cnt
    kernel = functools.partial(_block_kernel, head_cnt=head_cnt,
                               scale=1.0 / math.sqrt(D))
    rep = lambda b: (0, 0)   # weights: same (whole) block every grid step

    flops = B * ((2 * T * C * 3 * C) + (4 * T * T * C)
                 + (2 * T * C * C) + (16 * T * C * C))
    transcendentals = B * (head_cnt * T * T + 4 * T * C + head_cnt * T)
    weight_bytes = 4 * (3 * C * C + 3 * C + C * C + C + 4 * C * C
                        + 4 * C + 4 * C * C + C + 4 * C)
    ce = pl.CostEstimate(flops=flops, transcendentals=transcendentals,
                         bytes_accessed=2 * B * T * C * 4 + B * weight_bytes)

    return pl.pallas_call(
        kernel,
        out_shape=jax.ShapeDtypeStruct((B, T, C), x.dtype),
        grid=(B,),
        in_specs=[
            pl.BlockSpec((1, T, C), lambda b: (b, 0, 0)),   # x
            pl.BlockSpec((1, C), rep),                      # ln1 weight
            pl.BlockSpec((1, C), rep),                      # ln1 bias
            pl.BlockSpec((C, 3 * C), rep),                  # wQkv
            pl.BlockSpec((1, 3 * C), rep),                  # bQkv
            pl.BlockSpec((C, C), rep),                      # wOut
            pl.BlockSpec((1, C), rep),                      # bOut
            pl.BlockSpec((1, C), rep),                      # ln2 weight
            pl.BlockSpec((1, C), rep),                      # ln2 bias
            pl.BlockSpec((C, 4 * C), rep),                  # ff lin1 W
            pl.BlockSpec((1, 4 * C), rep),                  # ff lin1 b
            pl.BlockSpec((4 * C, C), rep),                  # ff lin2 W
            pl.BlockSpec((1, C), rep),                      # ff lin2 b
        ],
        out_specs=pl.BlockSpec((1, T, C), lambda b: (b, 0, 0)),
        compiler_params=pltpu.CompilerParams(
            dimension_semantics=("parallel",),              # v7x: 2 TensorCores
            vmem_limit_bytes=32 * 1024 * 1024),
        cost_estimate=ce,
    )(x, *bp)


def pallas_lm_head(x_last, lnw, lnb, w_lm):
    B, C = x_last.shape
    V = w_lm.shape[1]
    return pl.pallas_call(
        _lm_head_kernel,
        out_shape=jax.ShapeDtypeStruct((B, V), x_last.dtype),
        in_specs=[
            pl.BlockSpec((B, C), lambda: (0, 0)),
            pl.BlockSpec((1, C), lambda: (0, 0)),
            pl.BlockSpec((1, C), lambda: (0, 0)),
            pl.BlockSpec((C, V), lambda: (0, 0)),
        ],
        out_specs=pl.BlockSpec((B, V), lambda: (0, 0)),
    )(x_last, lnw, lnb, w_lm)


def transformer_forward(idx, params, head_cnt):
    """Equivalent to Transformer.forward(idx, targets=None) in eval mode."""
    wte, wpe, blocks, ln_out_w, ln_out_b, w_lm = params
    x = pallas_embed(idx, wte, wpe)            # (B, T, C); drop = identity (eval)
    for bp in blocks:
        x = pallas_block(x, bp, head_cnt)      # fully fused block per pallas_call
    logits = pallas_lm_head(x[:, -1, :], ln_out_w, ln_out_b, w_lm)
    # TODO(synk): training path (targets -> cross-entropy loss) not implemented.
    return logits[:, None, :], None            # matches (wOut(x[:, [-1], :]), None)


# ----------------------------------------------------------------------------
# Pure-JAX reference (numerical sanity check)
# ----------------------------------------------------------------------------
def reference_forward(idx, params, head_cnt):
    wte, wpe, blocks, ln_out_w, ln_out_b, w_lm = params
    B, T = idx.shape
    C = wte.shape[1]
    D = C // head_cnt
    scale = 1.0 / math.sqrt(D)
    x = wte[idx] + wpe[jnp.arange(T)][None]
    for (ln1w, ln1b, wqkv, bqkv, wout, bout,
         ln2w, ln2b, w1, b1, w2, b2) in blocks:
        h = _layer_norm(x, ln1w, ln1b)
        qkv = h @ wqkv + bqkv
        q, k, v = jnp.split(qkv, 3, axis=-1)
        q = q.reshape(B, T, head_cnt, D).transpose(0, 2, 1, 3)
        k = k.reshape(B, T, head_cnt, D).transpose(0, 2, 1, 3)
        v = v.reshape(B, T, head_cnt, D).transpose(0, 2, 1, 3)
        att = jnp.einsum("bhtd,bhsd->bhts", q, k) * scale
        mask = jnp.triu(jnp.ones((T, T), dtype=bool), k=1)
        att = jnp.where(mask[None, None], -jnp.inf, att)
        att = jax.nn.softmax(att, axis=-1)
        y = jnp.einsum("bhts,bhsd->bhtd", att, v)
        y = y.transpose(0, 2, 1, 3).reshape(B, T, C)
        x = x + (y @ wout + bout)
        h2 = _layer_norm(x, ln2w, ln2b)
        f = _gelu_tanh(h2 @ w1 + b1)
        x = x + (f @ w2 + b2)
    xn = _layer_norm(x[:, -1, :], ln_out_w, ln_out_b)
    return (xn @ w_lm)[:, None, :]


# ----------------------------------------------------------------------------
# Main
# ----------------------------------------------------------------------------
if __name__ == "__main__":
    tokenCnt, embLen, headCnt, layerCnt, maxCtxLen = 64, 32, 4, 2, 16
    B, T = 2, 8
    assert embLen % headCnt == 0 and T <= maxCtxLen

    key = jax.random.PRNGKey(0)
    keys = jax.random.split(key, 4 + layerCnt)
    C = embLen

    wte = 0.02 * jax.random.normal(keys[0], (tokenCnt, C), jnp.float32)
    wpe = 0.02 * jax.random.normal(keys[1], (maxCtxLen, C), jnp.float32)
    w_lm = 0.02 * jax.random.normal(keys[2], (C, tokenCnt), jnp.float32)
    ln_out_w = jnp.ones((1, C), jnp.float32)
    ln_out_b = jnp.zeros((1, C), jnp.float32)

    blocks = []
    for li in range(layerCnt):
        bk = jax.random.split(keys[4 + li], 12)
        blocks.append((
            1.0 + 0.1 * jax.random.normal(bk[0], (1, C), jnp.float32),     # ln1 w
            0.02 * jax.random.normal(bk[1], (1, C), jnp.float32),          # ln1 b
            0.02 * jax.random.normal(bk[2], (C, 3 * C), jnp.float32),      # wQkv
            0.02 * jax.random.normal(bk[3], (1, 3 * C), jnp.float32),      # bQkv
            0.02 * jax.random.normal(bk[4], (C, C), jnp.float32),          # wOut
            0.02 * jax.random.normal(bk[5], (1, C), jnp.float32),          # bOut
            1.0 + 0.1 * jax.random.normal(bk[6], (1, C), jnp.float32),     # ln2 w
            0.02 * jax.random.normal(bk[7], (1, C), jnp.float32),          # ln2 b
            0.02 * jax.random.normal(bk[8], (C, 4 * C), jnp.float32),      # lin1 W
            0.02 * jax.random.normal(bk[9], (1, 4 * C), jnp.float32),      # lin1 b
            0.02 * jax.random.normal(bk[10], (4 * C, C), jnp.float32),     # lin2 W
            0.02 * jax.random.normal(bk[11], (1, C), jnp.float32),         # lin2 b
        ))

    params = (wte, wpe, tuple(blocks), ln_out_w, ln_out_b, w_lm)
    idx = jax.random.randint(keys[3], (B, T), 0, tokenCnt, dtype=jnp.int32)

    logits, loss = transformer_forward(idx, params, headCnt)
    logits = jax.block_until_ready(logits)

    ref_logits = reference_forward(idx, params, headCnt)
    assert logits.shape == (B, 1, tokenCnt) and loss is None
    max_err = float(jnp.max(jnp.abs(logits - ref_logits)))
    assert jnp.allclose(logits, ref_logits, atol=2e-3, rtol=2e-3), (
        f"mismatch vs reference (max abs err {max_err})")

    print("KERNEL_OK")
</pallas_src>

<mosaic_0001>
module attributes {stable_mosaic.version = 11 : i64} {
  func.func @_embed_kernel(%arg0: i32, %arg1: memref<2x8xi32, #tpu.memory_space<smem>>, %arg2: memref<64x32xf32, #tpu.memory_space<vmem>>, %arg3: memref<16x32xf32, #tpu.memory_space<vmem>>, %arg4: memref<1x8x32xf32, #tpu.memory_space<vmem>>) attributes {dimension_semantics = [#tpu.dimension_semantics<arbitrary>], iteration_bounds = array<i64: 2>, scalar_prefetch = 1 : i64, scratch_operands = 0 : i64, tpu.core_type = #tpu.core_type<tc>, window_params = [{pipeline_mode = #tpu.pipeline_mode<synchronous>, transform_indices = @transform_0, window_bounds = array<i64: 64, 32>}, {pipeline_mode = #tpu.pipeline_mode<synchronous>, transform_indices = @transform_1, window_bounds = array<i64: 16, 32>}, {transform_indices = @transform_2, window_bounds = array<i64: 1, 8, 32>}]} {
    %0 = arith.index_cast %arg0 : i32 to index
    %c0 = arith.constant 0 : index
    %1 = memref.load %arg1[%0, %c0] : memref<2x8xi32, #tpu.memory_space<smem>>
    %2 = arith.index_cast %1 : i32 to index
    %c0_0 = arith.constant 0 : index
    %3 = vector.load %arg2[%2, %c0_0] : memref<64x32xf32, #tpu.memory_space<vmem>>, vector<1x32xf32>
    %c0_1 = arith.constant 0 : index
    %c0_2 = arith.constant 0 : index
    %4 = vector.load %arg3[%c0_1, %c0_2] : memref<16x32xf32, #tpu.memory_space<vmem>>, vector<1x32xf32>
    %5 = arith.addf %3, %4 : vector<1x32xf32>
    %c0_3 = arith.constant 0 : index
    %c0_4 = arith.constant 0 : index
    %c0_5 = arith.constant 0 : index
    %6 = vector.load %arg4[%c0_3, %c0_4, %c0_5] : memref<1x8x32xf32, #tpu.memory_space<vmem>>, vector<1x1x32xf32>
    %7 = vector.shape_cast %6 : vector<1x1x32xf32> to vector<1x32xf32>
    %8 = vector.shape_cast %5 : vector<1x32xf32> to vector<1x1x32xf32>
    tpu.vector_store %arg4[%c0_3, %c0_4, %c0_5], %8 {strides = array<i32>} : memref<1x8x32xf32, #tpu.memory_space<vmem>>, vector<1x1x32xf32>,
    %9 = arith.index_cast %arg0 : i32 to index
    %c1 = arith.constant 1 : index
    %10 = memref.load %arg1[%9, %c1] : memref<2x8xi32, #tpu.memory_space<smem>>
    %11 = arith.index_cast %10 : i32 to index
    %c0_6 = arith.constant 0 : index
    %12 = vector.load %arg2[%11, %c0_6] : memref<64x32xf32, #tpu.memory_space<vmem>>, vector<1x32xf32>
    %c1_7 = arith.constant 1 : index
    %c0_8 = arith.constant 0 : index
    %13 = vector.load %arg3[%c1_7, %c0_8] : memref<16x32xf32, #tpu.memory_space<vmem>>, vector<1x32xf32>
    %14 = arith.addf %12, %13 : vector<1x32xf32>
    %c0_9 = arith.constant 0 : index
    %c1_10 = arith.constant 1 : index
    %c0_11 = arith.constant 0 : index
    %15 = vector.load %arg4[%c0_9, %c1_10, %c0_11] : memref<1x8x32xf32, #tpu.memory_space<vmem>>, vector<1x1x32xf32>
    %16 = vector.shape_cast %15 : vector<1x1x32xf32> to vector<1x32xf32>
    %17 = vector.shape_cast %14 : vector<1x32xf32> to vector<1x1x32xf32>
    tpu.vector_store %arg4[%c0_9, %c1_10, %c0_11], %17 {strides = array<i32>} : memref<1x8x32xf32, #tpu.memory_space<vmem>>, vector<1x1x32xf32>,
    %18 = arith.index_cast %arg0 : i32 to index
    %c2 = arith.constant 2 : index
    %19 = memref.load %arg1[%18, %c2] : memref<2x8xi32, #tpu.memory_space<smem>>
    %20 = arith.index_cast %19 : i32 to index
    %c0_12 = arith.constant 0 : index
    %21 = vector.load %arg2[%20, %c0_12] : memref<64x32xf32, #tpu.memory_space<vmem>>, vector<1x32xf32>
    %c2_13 = arith.constant 2 : index
    %c0_14 = arith.constant 0 : index
    %22 = vector.load %arg3[%c2_13, %c0_14] : memref<16x32xf32, #tpu.memory_space<vmem>>, vector<1x32xf32>
    %23 = arith.addf %21, %22 : vector<1x32xf32>
    %c0_15 = arith.constant 0 : index
    %c2_16 = arith.constant 2 : index
    %c0_17 = arith.constant 0 : index
    %24 = vector.load %arg4[%c0_15, %c2_16, %c0_17] : memref<1x8x32xf32, #tpu.memory_space<vmem>>, vector<1x1x32xf32>
    %25 = vector.shape_cast %24 : vector<1x1x32xf32> to vector<1x32xf32>
    %26 = vector.shape_cast %23 : vector<1x32xf32> to vector<1x1x32xf32>
    tpu.vector_store %arg4[%c0_15, %c2_16, %c0_17], %26 {strides = array<i32>} : memref<1x8x32xf32, #tpu.memory_space<vmem>>, vector<1x1x32xf32>,
    %27 = arith.index_cast %arg0 : i32 to index
    %c3 = arith.constant 3 : index
    %28 = memref.load %arg1[%27, %c3] : memref<2x8xi32, #tpu.memory_space<smem>>
    %29 = arith.index_cast %28 : i32 to index
    %c0_18 = arith.constant 0 : index
    %30 = vector.load %arg2[%29, %c0_18] : memref<64x32xf32, #tpu.memory_space<vmem>>, vector<1x32xf32>
    %c3_19 = arith.constant 3 : index
    %c0_20 = arith.constant 0 : index
    %31 = vector.load %arg3[%c3_19, %c0_20] : memref<16x32xf32, #tpu.memory_space<vmem>>, vector<1x32xf32>
    %32 = arith.addf %30, %31 : vector<1x32xf32>
    %c0_21 = arith.constant 0 : index
    %c3_22 = arith.constant 3 : index
    %c0_23 = arith.constant 0 : index
    %33 = vector.load %arg4[%c0_21, %c3_22, %c0_23] : memref<1x8x32xf32, #tpu.memory_space<vmem>>, vector<1x1x32xf32>
    %34 = vector.shape_cast %33 : vector<1x1x32xf32> to vector<1x32xf32>
    %35 = vector.shape_cast %32 : vector<1x32xf32> to vector<1x1x32xf32>
    tpu.vector_store %arg4[%c0_21, %c3_22, %c0_23], %35 {strides = array<i32>} : memref<1x8x32xf32, #tpu.memory_space<vmem>>, vector<1x1x32xf32>,
    %36 = arith.index_cast %arg0 : i32 to index
    %c4 = arith.constant 4 : index
    %37 = memref.load %arg1[%36, %c4] : memref<2x8xi32, #tpu.memory_space<smem>>
    %38 = arith.index_cast %37 : i32 to index
    %c0_24 = arith.constant 0 : index
    %39 = vector.load %arg2[%38, %c0_24] : memref<64x32xf32, #tpu.memory_space<vmem>>, vector<1x32xf32>
    %c4_25 = arith.constant 4 : index
    %c0_26 = arith.constant 0 : index
    %40 = vector.load %arg3[%c4_25, %c0_26] : memref<16x32xf32, #tpu.memory_space<vmem>>, vector<1x32xf32>
    %41 = arith.addf %39, %40 : vector<1x32xf32>
    %c0_27 = arith.constant 0 : index
    %c4_28 = arith.constant 4 : index
    %c0_29 = arith.constant 0 : index
    %42 = vector.load %arg4[%c0_27, %c4_28, %c0_29] : memref<1x8x32xf32, #tpu.memory_space<vmem>>, vector<1x1x32xf32>
    %43 = vector.shape_cast %42 : vector<1x1x32xf32> to vector<1x32xf32>
    %44 = vector.shape_cast %41 : vector<1x32xf32> to vector<1x1x32xf32>
    tpu.vector_store %arg4[%c0_27, %c4_28, %c0_29], %44 {strides = array<i32>} : memref<1x8x32xf32, #tpu.memory_space<vmem>>, vector<1x1x32xf32>,
    %45 = arith.index_cast %arg0 : i32 to index
    %c5 = arith.constant 5 : index
    %46 = memref.load %arg1[%45, %c5] : memref<2x8xi32, #tpu.memory_space<smem>>
    %47 = arith.index_cast %46 : i32 to index
    %c0_30 = arith.constant 0 : index
    %48 = vector.load %arg2[%47, %c0_30] : memref<64x32xf32, #tpu.memory_space<vmem>>, vector<1x32xf32>
    %c5_31 = arith.constant 5 : index
    %c0_32 = arith.constant 0 : index
    %49 = vector.load %arg3[%c5_31, %c0_32] : memref<16x32xf32, #tpu.memory_space<vmem>>, vector<1x32xf32>
    %50 = arith.addf %48, %49 : vector<1x32xf32>
    %c0_33 = arith.constant 0 : index
    %c5_34 = arith.constant 5 : index
    %c0_35 = arith.constant 0 : index
    %51 = vector.load %arg4[%c0_33, %c5_34, %c0_35] : memref<1x8x32xf32, #tpu.memory_space<vmem>>, vector<1x1x32xf32>
    %52 = vector.shape_cast %51 : vector<1x1x32xf32> to vector<1x32xf32>
    %53 = vector.shape_cast %50 : vector<1x32xf32> to vector<1x1x32xf32>
    tpu.vector_store %arg4[%c0_33, %c5_34, %c0_35], %53 {strides = array<i32>} : memref<1x8x32xf32, #tpu.memory_space<vmem>>, vector<1x1x32xf32>,
    %54 = arith.index_cast %arg0 : i32 to index
    %c6 = arith.constant 6 : index
    %55 = memref.load %arg1[%54, %c6] : memref<2x8xi32, #tpu.memory_space<smem>>
    %56 = arith.index_cast %55 : i32 to index
    %c0_36 = arith.constant 0 : index
    %57 = vector.load %arg2[%56, %c0_36] : memref<64x32xf32, #tpu.memory_space<vmem>>, vector<1x32xf32>
    %c6_37 = arith.constant 6 : index
    %c0_38 = arith.constant 0 : index
    %58 = vector.load %arg3[%c6_37, %c0_38] : memref<16x32xf32, #tpu.memory_space<vmem>>, vector<1x32xf32>
    %59 = arith.addf %57, %58 : vector<1x32xf32>
    %c0_39 = arith.constant 0 : index
    %c6_40 = arith.constant 6 : index
    %c0_41 = arith.constant 0 : index
    %60 = vector.load %arg4[%c0_39, %c6_40, %c0_41] : memref<1x8x32xf32, #tpu.memory_space<vmem>>, vector<1x1x32xf32>
    %61 = vector.shape_cast %60 : vector<1x1x32xf32> to vector<1x32xf32>
    %62 = vector.shape_cast %59 : vector<1x32xf32> to vector<1x1x32xf32>
    tpu.vector_store %arg4[%c0_39, %c6_40, %c0_41], %62 {strides = array<i32>} : memref<1x8x32xf32, #tpu.memory_space<vmem>>, vector<1x1x32xf32>,
    %63 = arith.index_cast %arg0 : i32 to index
    %c7 = arith.constant 7 : index
    %64 = memref.load %arg1[%63, %c7] : memref<2x8xi32, #tpu.memory_space<smem>>
    %65 = arith.index_cast %64 : i32 to index
    %c0_42 = arith.constant 0 : index
    %66 = vector.load %arg2[%65, %c0_42] : memref<64x32xf32, #tpu.memory_space<vmem>>, vector<1x32xf32>
    %c7_43 = arith.constant 7 : index
    %c0_44 = arith.constant 0 : index
    %67 = vector.load %arg3[%c7_43, %c0_44] : memref<16x32xf32, #tpu.memory_space<vmem>>, vector<1x32xf32>
    %68 = arith.addf %66, %67 : vector<1x32xf32>
    %c0_45 = arith.constant 0 : index
    %c7_46 = arith.constant 7 : index
    %c0_47 = arith.constant 0 : index
    %69 = vector.load %arg4[%c0_45, %c7_46, %c0_47] : memref<1x8x32xf32, #tpu.memory_space<vmem>>, vector<1x1x32xf32>
    %70 = vector.shape_cast %69 : vector<1x1x32xf32> to vector<1x32xf32>
    %71 = vector.shape_cast %68 : vector<1x32xf32> to vector<1x1x32xf32>
    tpu.vector_store %arg4[%c0_45, %c7_46, %c0_47], %71 {strides = array<i32>} : memref<1x8x32xf32, #tpu.memory_space<vmem>>, vector<1x1x32xf32>,
    return
  }
  func.func @transform_0(%arg0: i32, %arg1: memref<2x8xi32, #tpu.memory_space<smem>>) -> (i32, i32) {
    %c0_i32 = arith.constant 0 : i32
    %c0_i32_0 = arith.constant 0 : i32
    %c0_i32_1 = arith.constant 0 : i32
    return %c0_i32, %c0_i32_0 : i32, i32
  }
  func.func @transform_1(%arg0: i32, %arg1: memref<2x8xi32, #tpu.memory_space<smem>>) -> (i32, i32) {
    %c0_i32 = arith.constant 0 : i32
    %c0_i32_0 = arith.constant 0 : i32
    %c0_i32_1 = arith.constant 0 : i32
    return %c0_i32, %c0_i32_0 : i32, i32
  }
  func.func @transform_2(%arg0: i32, %arg1: memref<2x8xi32, #tpu.memory_space<smem>>) -> (i32, i32, i32) {
    %c0_i32 = arith.constant 0 : i32
    %c0_i32_0 = arith.constant 0 : i32
    %c0_i32_1 = arith.constant 0 : i32
    return %arg0, %c0_i32, %c0_i32_0 : i32, i32, i32
  }
}

</mosaic_0001>

<llo_original>
// kernel: tpu_custom_call.1
$region0: #{tpu_custom_call.1}
  #allocation0 [shape = 'u32[]', space=smem, size = 0x4, offset = 0x4, fixed_abs, tag = 'smem constant byte address 0x4 - core index']
  #allocation1 [shape = 'u32[72,128]{1,0:T(1,128)}', space=vmem, size = 0x9000, scoped, tag = 'internal scratch']
  #allocation2 [shape = 's32[1]{0}', space=sflag, size = 0x4, scoped, tag = 'scoped memory for tpu_custom_call.1']
  #allocation3 [shape = 'u8[1024]{0}', space=smem, size = 0x400, scoped, tag = 'prefetched SMEM operand 0']
  %s0 = inlined_call_operand.vmem [shape: s32[2,8], index: 0, kind: input, shape index: {}]
  %s1 = inlined_call_operand.vmem [shape: f32[64,32], index: 1, kind: input, shape index: {}]
  %s2 = inlined_call_operand.vmem [shape: f32[16,32], index: 2, kind: input, shape index: {}]
  %s3 = inlined_call_operand.hbm [shape: f32[2,8,32], index: 3, kind: output, shape index: {}]
  %s4 = sld [smem:[#allocation0]]
  $region41: #{tpu_custom_call.1} parent=0
    _
  %s6 = ssub.s32 1, %s4
  %s7 = scalar_select 0, %s6, %s4
  %s9 = sshll.u32 %s0, 4
  %s10 = int_to_ptr.vmem [resolvable:$true] %s9
  %12 = dma.vmem_to_smem %s10, 32, [#allocation3], [#allocation2]
  %14 = dma.done [#allocation2], 32
  %15 = sfence
  $region1: #{tpu_custom_call.1} parent=0
    #allocation4 [shape = 'u8[8192]{0}', space=vmem, size = 0x2000, scoped, tag = 'output window, operand 0']
    #allocation5 [shape = 's32[2]{0}', space=sflag, size = 0x8, scoped, tag = 'scoped memory for tpu_custom_call.1']
    %16 = vsyncpa [#allocation5], 0
    %s17 = scalar_lea.sflag [#allocation5], 1
    %18 = vsyncpa %s17, 0
    loop: start=0, step=1, limit=4
    $region2: #{tpu_custom_call.1} parent=1 // loop_pre_header
      _
    $region3: #{tpu_custom_call.1} parent=1 // loop_header
      %s20 = sphi 0, %s24
      %p21 = scmp.ge.s32.totalorder %s20, 4
      %s28 = sphi 0, %s28
      %s30 = sphi 0, %s28
      %s31 = sphi 0, %s30
      %s45 = sphi 0, %s31
      %s49 = sphi 0, %s49
      %s51 = sphi 0, %s49
      %s52 = sphi 0, %s51
      %s66 = sphi 0, %s52
      %s72 = sphi 0, %s74
      %s75 = sphi 0, %s72
      %s76 = sphi 0, %s75
      %s92 = sphi 0, %s76
    $region4: #{tpu_custom_call.1} parent=1 // loop_header_branch
      %23 = sbr.rel (%p21) target = $region8
    $region5: #{tpu_custom_call.1} parent=1 // loop_body
      %s25 = ssub.s32 %s20, 1
      %s26 = ssub.s32 %s20, 2
      %s27 = sadd.s32 %s20, 1
      %s29 = sadd.s32 %s28, 1
      %p32 = scmp.eq.s32.totalorder %s20, 1
      %p33 = scmp.ne.s32.totalorder %s28, %s30
      %p34 = scmp.eq.s32.totalorder %s20, 0
      %p35 = por %p33, %p34
      %p36 = scmp.ne.s32.totalorder %s28, %s30
      %p37 = scmp.eq.s32.totalorder %s25, 1
      %p38 = por %p36, %p37
      %p39 = scmp.ne.s32.totalorder %s30, %s31
      %p40 = scmp.eq.s32.totalorder %s25, 0
      %p41 = por %p39, %p40
      %p42 = scmp.ne.s32.totalorder %s30, %s31
      %p43 = scmp.eq.s32.totalorder %s26, 1
      %p44 = por %p42, %p43
      %p46 = scmp.ne.s32.totalorder %s31, %s45
      %p47 = scmp.eq.s32.totalorder %s26, 0
      %p48 = por %p46, %p47
      %s50 = sadd.s32 %s49, 1
      %p53 = scmp.eq.s32.totalorder %s20, 1
      %p54 = scmp.ne.s32.totalorder %s49, %s51
      %p55 = scmp.eq.s32.totalorder %s20, 0
      %p56 = por %p54, %p55
      %p57 = scmp.ne.s32.totalorder %s49, %s51
      %p58 = scmp.eq.s32.totalorder %s25, 1
      %p59 = por %p57, %p58
      %p60 = scmp.ne.s32.totalorder %s51, %s52
      %p61 = scmp.eq.s32.totalorder %s25, 0
      %p62 = por %p60, %p61
      %p63 = scmp.ne.s32.totalorder %s51, %s52
      %p64 = scmp.eq.s32.totalorder %s26, 1
      %p65 = por %p63, %p64
      %p67 = scmp.ne.s32.totalorder %s52, %s66
      %p68 = scmp.eq.s32.totalorder %s26, 0
      %p69 = por %p67, %p68
      %s70 = ssub.s32 %s20, %s27
      %p71 = scmp.eq.s32.totalorder %s70, 0
      %s73 = sadd.s32 %s72, 1
      %s74 = scalar_select %p71, %s72, %s73
      %p77 = pneg %p71
      %p78 = scmp.eq.s32.totalorder %s20, 1
      %p79 = por %p77, %p78
      %p80 = scmp.ne.s32.totalorder %s72, %s75
      %p81 = scmp.eq.s32.totalorder %s20, 0
      %p82 = por %p80, %p81
      %p83 = scmp.ne.s32.totalorder %s72, %s75
      %p84 = scmp.eq.s32.totalorder %s25, 1
      %p85 = por %p83, %p84
      %p86 = scmp.ne.s32.totalorder %s75, %s76
      %p87 = scmp.eq.s32.totalorder %s25, 0
      %p88 = por %p86, %p87
      %p89 = scmp.ne.s32.totalorder %s75, %s76
      %p90 = scmp.eq.s32.totalorder %s26, 1
      %p91 = por %p89, %p90
      %p93 = scmp.ne.s32.totalorder %s76, %s92
      %p94 = scmp.eq.s32.totalorder %s26, 0
      %p95 = por %p93, %p94
      %p96 = scmp.le.s32.totalorder 1, %s20
      %p97 = scmp.lt.s32.totalorder %s20, 3
      %p98 = pnand %p96, %p97
      %p99 = pneg %p98
      // Predicated region
      $region9: #{tpu_custom_call.1} parent=5 // pred_check
        _
      $region10: #{tpu_custom_call.1} parent=5 // pred_check_branch
        %101 = sbr.rel (%p98) target = $region12
      $region11: #{tpu_custom_call.1} parent=5 // pred_region
        %s102 = ssub.s32 %s20, 1
        // Predicated region
        $region13: #{tpu_custom_call.1} parent=11 // pred_check
          %p103 = pneg %p41
        $region14: #{tpu_custom_call.1} parent=11 // pred_check_branch
          %105 = sbr.rel (%p103) target = $region16
        $region15: #{tpu_custom_call.1} parent=11 // pred_region
          _
        $region16: #{tpu_custom_call.1} parent=11 // pred_fallthru
          _
        // Predicated region
        $region17: #{tpu_custom_call.1} parent=11 // pred_check
          %p106 = pneg %p62
        $region18: #{tpu_custom_call.1} parent=11 // pred_check_branch
          %108 = sbr.rel (%p106) target = $region20
        $region19: #{tpu_custom_call.1} parent=11 // pred_region
          _
        $region20: #{tpu_custom_call.1} parent=11 // pred_fallthru
          _
      $region12: #{tpu_custom_call.1} parent=5 // pred_fallthru
        _
      %p109 = scmp.lt.s32.totalorder %s20, 2
      // Predicated region
      $region21: #{tpu_custom_call.1} parent=5 // pred_check
        %p110 = pneg %p109
      $region22: #{tpu_custom_call.1} parent=5 // pred_check_branch
        %112 = sbr.rel (%p110) target = $region24
      $region23: #{tpu_custom_call.1} parent=5 // pred_region
        _
      $region24: #{tpu_custom_call.1} parent=5 // pred_fallthru
        _
      %p113 = scmp.le.s32.totalorder 1, %s20
      %p114 = scmp.lt.s32.totalorder %s20, 3
      %p115 = pnand %p113, %p114
      %p116 = pneg %p115
      // Predicated region
      $region25: #{tpu_custom_call.1} parent=5 // pred_check
        _
      $region26: #{tpu_custom_call.1} parent=5 // pred_check_branch
        %118 = sbr.rel (%p115) target = $region28
      $region27: #{tpu_custom_call.1} parent=5 // pred_region
        %s119 = ssub.s32 %s20, 1
        %p120 = pneg %p41
        %p121 = pneg %p38
        %p122 = pneg %p62
        %p123 = pneg %p59
        %p124 = pneg %p88
        %p125 = pneg %p85
        %s126 = sand.u32 %s75, 1
        %s127 = scalar_lea.sflag [#allocation5], %s126
        %s128 = sand.u32 %s75, 1
        %s129 = smul.addr %s128, 8
        %s130 = scalar_lea.vmem [#allocation4], %s129
        %s131 = smul.u32 %s25, 128
        %s132 = sld [smem:[#allocation3 + %s131]]
        %s133 = scalar_lea.vmem %s1, %s132
        %v134 = vld [vmem:[%s133] sm:$0x1]
        %v135 = vld [vmem:[%s2] sm:$0x1]
        %v136 = vadd.f32 %v134, %v135
        %vm137 = vcmask 253952
        %138 = vst.msk [vmem:[%s130] sm:$0x1] %vm137, %v136
        %s139 = sadd.s32 %s131, 1
        %s140 = sld [smem:[#allocation3 + %s139]]
        %s141 = scalar_lea.vmem %s1, %s140
        %v142 = vld [vmem:[%s141] sm:$0x1]
        %v143 = vld [vmem:[%s2 + $0x1] sm:$0x1]
        %v144 = vadd.f32 %v142, %v143
        %145 = vst.msk [vmem:[%s130 + $0x1] sm:$0x1] %vm137, %v144
        %s146 = sadd.s32 %s131, 2
        %s147 = sld [smem:[#allocation3 + %s146]]
        %s148 = scalar_lea.vmem %s1, %s147
        %v149 = vld [vmem:[%s148] sm:$0x1]
        %v150 = vld [vmem:[%s2 + $0x2] sm:$0x1]
        %v151 = vadd.f32 %v149, %v150
        %152 = vst.msk [vmem:[%s130 + $0x2] sm:$0x1] %vm137, %v151
        %s153 = sadd.s32 %s131, 3
        %s154 = sld [smem:[#allocation3 + %s153]]
        %s155 = scalar_lea.vmem %s1, %s154
        %v156 = vld [vmem:[%s155] sm:$0x1]
        %v157 = vld [vmem:[%s2 + $0x3] sm:$0x1]
        %v158 = vadd.f32 %v156, %v157
        %159 = vst.msk [vmem:[%s130 + $0x3] sm:$0x1] %vm137, %v158
        %s160 = sadd.s32 %s131, 4
        %s161 = sld [smem:[#allocation3 + %s160]]
        %s162 = scalar_lea.vmem %s1, %s161
        %v163 = vld [vmem:[%s162] sm:$0x1]
        %v164 = vld [vmem:[%s2 + $0x4] sm:$0x1]
        %v165 = vadd.f32 %v163, %v164
        %166 = vst.msk [vmem:[%s130 + $0x4] sm:$0x1] %vm137, %v165
        %s167 = sadd.s32 %s131, 5
        %s168 = sld [smem:[#allocation3 + %s167]]
        %s169 = scalar_lea.vmem %s1, %s168
        %v170 = vld [vmem:[%s169] sm:$0x1]
        %v171 = vld [vmem:[%s2 + $0x5] sm:$0x1]
        %v172 = vadd.f32 %v170, %v171
        %173 = vst.msk [vmem:[%s130 + $0x5] sm:$0x1] %vm137, %v172
        %s174 = sadd.s32 %s131, 6
        %s175 = sld [smem:[#allocation3 + %s174]]
        %s176 = scalar_lea.vmem %s1, %s175
        %v177 = vld [vmem:[%s176] sm:$0x1]
        %v178 = vld [vmem:[%s2 + $0x6] sm:$0x1]
        %v179 = vadd.f32 %v177, %v178
        %180 = vst.msk [vmem:[%s130 + $0x6] sm:$0x1] %vm137, %v179
        %s181 = sadd.s32 %s131, 7
        %s182 = sld [smem:[#allocation3 + %s181]]
        %s183 = scalar_lea.vmem %s1, %s182
        %v184 = vld [vmem:[%s183] sm:$0x1]
        %v185 = vld [vmem:[%s2 + $0x7] sm:$0x1]
        %v186 = vadd.f32 %v184, %v185
        %187 = vst.msk [vmem:[%s130 + $0x7] sm:$0x1] %vm137, %v186
        %s188 = sand.u32 %s75, 1
        %s189 = scalar_lea.sflag [#allocation5], %s188
        %s190 = sand.u32 %s75, 1
        %s191 = smul.addr %s190, 8
        %s192 = scalar_lea.vmem [#allocation4], %s191
        // Predicated region
        $region29: #{tpu_custom_call.1} parent=27 // pred_check
          %p193 = pneg %p85
        $region30: #{tpu_custom_call.1} parent=27 // pred_check_branch
          %195 = sbr.rel (%p193) target = $region32
        $region31: #{tpu_custom_call.1} parent=27 // pred_region
          %197 = vsyncadd %s189, 0
          %s198 = smul.addr %s25, 8
          %s199 = scalar_lea.hbm %s3, %s198
          %s201 = sshll.u32 %s192, 4
          %s202 = int_to_ptr.vmem [resolvable:$true] %s201
          %s203 = sshll.u32 %s199, 4
          %s204 = int_to_ptr.hbm [resolvable:$true] %s203
          %206 = dma.vmem_to_hbm [thread:$0]  %s202, 128, %s204, %s189
        $region32: #{tpu_custom_call.1} parent=27 // pred_fallthru
          _
      $region28: #{tpu_custom_call.1} parent=5 // pred_fallthru
        _
      %p207 = scmp.le.s32.totalorder 2, %s20
      // Predicated region
      $region33: #{tpu_custom_call.1} parent=5 // pred_check
        %p208 = pneg %p207
      $region34: #{tpu_custom_call.1} parent=5 // pred_check_branch
        %210 = sbr.rel (%p208) target = $region36
      $region35: #{tpu_custom_call.1} parent=5 // pred_region
        %s211 = ssub.s32 %s20, 2
        // Predicated region
        $region37: #{tpu_custom_call.1} parent=35 // pred_check
          %p212 = pneg %p91
        $region38: #{tpu_custom_call.1} parent=35 // pred_check_branch
          %214 = sbr.rel (%p212) target = $region40
        $region39: #{tpu_custom_call.1} parent=35 // pred_region
          %s215 = sand.u32 %s76, 1
          %s216 = scalar_lea.sflag [#allocation5], %s215
          %s217 = sand.u32 %s76, 1
          %s218 = smul.addr %s217, 8
          %s219 = scalar_lea.vmem [#allocation4], %s218
          %221 = dma.done %s216, 128
        $region40: #{tpu_custom_call.1} parent=35 // pred_fallthru
          _
      $region36: #{tpu_custom_call.1} parent=5 // pred_fallthru
        _
    $region6: #{tpu_custom_call.1} parent=1 // loop_footer
      %s24 = sadd.s32 1, %s20
    $region7: #{tpu_custom_call.1} parent=1 // loop_footer_branch
      %19 = sbr.rel target = $region3
    $region8: #{tpu_custom_call.1} parent=1 // loop_exit
      _
    %222 = vsyncpa [#allocation5], 1
    %s223 = scalar_lea.sflag [#allocation5], 1
    %224 = vsyncpa %s223, 1

</llo_original>
